<compile_context>
chip_gen: v7x
topology: tpu7x:2x2x1
jax: 0.10.0
libtpu: 0.0.40
codegen_flags: <defaults>
</compile_context>

<pallas_src>
import math

import jax
import jax.numpy as jnp
from jax.experimental import pallas as pl
from jax.experimental.pallas import tpu as pltpu


# ----------------------------- Pallas kernel -----------------------------

def _add_pe_kernel(x_ref, pe_ref, o_ref):
    # x_ref / o_ref: (Bb, ts, D)   batch block x sequence tile, lane-dense D
    # pe_ref:        (ts, D)       positional-encoding rows, broadcast over batch
    x = x_ref[...]
    pe = pe_ref[...]
    o_ref[...] = (x + pe[None, :, :]).astype(o_ref.dtype)


# ----------------------------- Budget / tiling helpers -----------------------------

def _vmem_limit_and_block_budget():
    """Generation-aware scoped-VMEM limit and per-array block byte budget."""
    try:
        cap = int(pltpu.get_tpu_info().vmem_capacity_bytes)
    except Exception:  # pragma: no cover - fall back to v5e/v6e capacity
        cap = 128 * 1024 * 1024
    # Never ask for all of physical VMEM; keep compiler scratch headroom.
    limit = min(48 * 1024 * 1024, (cap * 3) // 4)
    # 2 buffers x 3 streams (x, pe, out); keep total pipelined footprint well
    # inside the limit. Smaller blocks on small-VMEM chips (v7x), bigger on
    # v5e/v6e -- mem-bound adds plateau by ~1 MiB blocks anyway.
    block_budget = limit // 12 if cap <= 64 * 1024 * 1024 else limit // 6
    return limit, block_budget


def _choose_tiles(B, S, D, dtype, max_seq_tile, block_budget):
    """Pick (Bb, ts): batch block and sublane-aligned sequence tile."""
    item = jnp.dtype(dtype).itemsize
    sub = max(8, 32 // item)            # 8 (f32) / 16 (bf16) / 32 (int8, fp8)

    # Batch block: power-of-2 divisor of B up to 8 (amortizes per-step overhead),
    # shrunk if even a minimal seq tile would blow the per-array byte budget.
    Bb = math.gcd(B, 8)
    while Bb > 1 and Bb * sub * D * item > block_budget:
        Bb //= 2

    # Sequence tile: as many rows as fit the byte budget (applied on ALL paths).
    rows = max(1, block_budget // max(Bb * D * item, 1))
    ts = min(S, max_seq_tile, rows)
    if ts < S:                          # tiled along seq -> keep sublane-aligned
        ts = max(sub, (ts // sub) * sub)
        ts = min(ts, S)
    return Bb, ts


# ----------------------------- Wrapper -----------------------------

def positional_encoding_forward(x, pe, *, max_seq_tile=512, donate_x=False):
    """out = x + pe[:S]  (dropout == identity), tiled over (seq, batch)."""
    B, S, D = x.shape
    assert pe.ndim == 2 and pe.shape[1] == D and pe.shape[0] >= S

    # Match pe dtype to x dtype (halves pe traffic / VMEM footprint for bf16).
    if pe.dtype != x.dtype:
        pe = pe.astype(x.dtype)

    vmem_limit, block_budget = _vmem_limit_and_block_budget()
    Bb, ts = _choose_tiles(B, S, D, x.dtype, max_seq_tile, block_budget)

    # seq tiles outer, batch inner -> pe block index constant across the inner
    # loop, so its DMA is skipped for repeated batch steps.
    grid = (pl.cdiv(S, ts), pl.cdiv(B, Bb))

    extra = {"input_output_aliases": {0: 0}} if donate_x else {}

    return pl.pallas_call(
        _add_pe_kernel,
        grid=grid,
        in_specs=[
            pl.BlockSpec((Bb, ts, D), lambda s, b: (b, s, 0)),   # x block
            pl.BlockSpec((ts, D), lambda s, b: (s, 0)),          # pe tile (batch-invariant)
        ],
        out_specs=pl.BlockSpec((Bb, ts, D), lambda s, b: (b, s, 0)),
        out_shape=jax.ShapeDtypeStruct((B, S, D), x.dtype),
        compiler_params=pltpu.CompilerParams(
            dimension_semantics=("parallel", "parallel"),
            vmem_limit_bytes=vmem_limit,
        ),
        **extra,
    )(x, pe)


# ----------------------------- PE buffer (matches PyTorch __init__) -----------------------------

def make_positional_encoding(max_seq_length, d_model, dtype=jnp.float32):
    assert d_model % 2 == 0, "PositionalEncoding requires an even d_model"
    pos = jnp.arange(max_seq_length, dtype=jnp.float32)[:, None]
    div = jnp.exp(jnp.arange(0, d_model, 2, dtype=jnp.float32)
                  * (-math.log(10000.0) / d_model))
    pe = jnp.zeros((max_seq_length, d_model), jnp.float32)
    pe = pe.at[:, 0::2].set(jnp.sin(pos * div))
    pe = pe.at[:, 1::2].set(jnp.cos(pos * div))
    return pe.astype(dtype)


# ----------------------------- Main -----------------------------

if __name__ == "__main__":
    # Small shapes consistent with the module; d_model lane-dense (x128).
    B, S, D = 2, 8, 128
    MAX_SEQ = 64

    key = jax.random.PRNGKey(0)
    x = jax.random.normal(key, (B, S, D), jnp.float32)
    pe = make_positional_encoding(MAX_SEQ, D)

    out = positional_encoding_forward(x, pe)
    jax.block_until_ready(out)

    ref = x + pe[None, :S, :]
    assert out.shape == (B, S, D)
    assert bool(jnp.all(jnp.isfinite(out)))
    assert bool(jnp.allclose(out, ref, atol=1e-6, rtol=1e-6))

    # Second check: bf16 activations, batch-blocked, multi-tile sequence grid.
    B2, S2 = 4, 48
    x2 = jax.random.normal(jax.random.PRNGKey(1), (B2, S2, D)).astype(jnp.bfloat16)
    out2 = positional_encoding_forward(x2, pe, max_seq_tile=16)
    jax.block_until_ready(out2)
    ref2 = (x2 + pe[None, :S2, :].astype(jnp.bfloat16)).astype(jnp.bfloat16)
    assert out2.dtype == jnp.bfloat16 and out2.shape == (B2, S2, D)
    assert bool(jnp.allclose(out2.astype(jnp.float32), ref2.astype(jnp.float32),
                             atol=5e-2, rtol=5e-2))

    print("KERNEL_OK")
</pallas_src>

<mosaic_0001>
module attributes {stable_mosaic.version = 11 : i64} {
  func.func @_add_pe_kernel(%arg0: i32, %arg1: i32, %arg2: memref<2x8x128xf32, #tpu.memory_space<vmem>>, %arg3: memref<8x128xf32, #tpu.memory_space<vmem>>, %arg4: memref<2x8x128xf32, #tpu.memory_space<vmem>>) attributes {dimension_semantics = [#tpu.dimension_semantics<parallel>, #tpu.dimension_semantics<parallel>], iteration_bounds = array<i64: 1, 1>, scalar_prefetch = 0 : i64, scratch_operands = 0 : i64, tpu.core_type = #tpu.core_type<tc>, window_params = [{transform_indices = @transform_0, window_bounds = array<i64: 2, 8, 128>}, {transform_indices = @transform_1, window_bounds = array<i64: 8, 128>}, {transform_indices = @transform_2, window_bounds = array<i64: 2, 8, 128>}]} {
    %c0 = arith.constant 0 : index
    %c0_0 = arith.constant 0 : index
    %c0_1 = arith.constant 0 : index
    %0 = vector.load %arg2[%c0, %c0_0, %c0_1] : memref<2x8x128xf32, #tpu.memory_space<vmem>>, vector<2x8x128xf32>
    %c0_2 = arith.constant 0 : index
    %c0_3 = arith.constant 0 : index
    %1 = vector.load %arg3[%c0_2, %c0_3] : memref<8x128xf32, #tpu.memory_space<vmem>>, vector<8x128xf32>
    %2 = vector.shape_cast %1 : vector<8x128xf32> to vector<1x8x128xf32>
    %3 = vector.broadcast %2 : vector<1x8x128xf32> to vector<2x8x128xf32>
    %4 = arith.addf %0, %3 : vector<2x8x128xf32>
    %c0_4 = arith.constant 0 : index
    %c0_5 = arith.constant 0 : index
    %c0_6 = arith.constant 0 : index
    %5 = vector.load %arg4[%c0_4, %c0_5, %c0_6] : memref<2x8x128xf32, #tpu.memory_space<vmem>>, vector<2x8x128xf32>
    tpu.vector_store %arg4[%c0_4, %c0_5, %c0_6], %4 {strides = array<i32>} : memref<2x8x128xf32, #tpu.memory_space<vmem>>, vector<2x8x128xf32>,
    return
  }
  func.func @transform_0(%arg0: i32, %arg1: i32) -> (i32, i32, i32) {
    %c0_i32 = arith.constant 0 : i32
    %c0_i32_0 = arith.constant 0 : i32
    return %arg1, %arg0, %c0_i32 : i32, i32, i32
  }
  func.func @transform_1(%arg0: i32, %arg1: i32) -> (i32, i32) {
    %c0_i32 = arith.constant 0 : i32
    %c0_i32_0 = arith.constant 0 : i32
    return %arg0, %c0_i32 : i32, i32
  }
  func.func @transform_2(%arg0: i32, %arg1: i32) -> (i32, i32, i32) {
    %c0_i32 = arith.constant 0 : i32
    %c0_i32_0 = arith.constant 0 : i32
    return %arg1, %arg0, %c0_i32 : i32, i32, i32
  }
}

</mosaic_0001>

<llo_original>
// kernel: tpu_custom_call.1
$region0: #{tpu_custom_call.1}
  #allocation0 [shape = 'u32[]', space=smem, size = 0x4, offset = 0x4, fixed_abs, tag = 'smem constant byte address 0x4 - core index']
  #allocation1 [shape = 'u32[144,128]{1,0:T(1,128)}', space=vmem, size = 0x12000, scoped, tag = 'internal scratch']
  %s0 = inlined_call_operand.hbm [shape: f32[2,8,128], index: 0, kind: input, shape index: {}]
  %s1 = inlined_call_operand.hbm [shape: f32[64,128], index: 1, kind: input, shape index: {}]
  %s2 = inlined_call_operand.hbm [shape: f32[2,8,128], index: 2, kind: output, shape index: {}]
  %s3 = sld [smem:[#allocation0]]
  $region26: #{tpu_custom_call.1} parent=0
    _
  %s5 = ssub.s32 1, %s3
  %s6 = scalar_select 0, %s5, %s3
  $region1: #{tpu_custom_call.1} parent=0
    #allocation2 [shape = 'u8[8192]{0}', space=vmem, size = 0x2000, scoped, tag = 'input window, operand 0, single buffered']
    #allocation3 [shape = 's32[1]{0}', space=sflag, size = 0x4, scoped, tag = 'scoped memory for tpu_custom_call.1']
    #allocation4 [shape = 's32[1]{0}', space=sflag, size = 0x4, scoped, tag = 'scoped memory for tpu_custom_call.1']
    #allocation5 [shape = 'u8[4096]{0}', space=vmem, size = 0x1000, scoped, tag = 'input window, operand 1, single buffered']
    #allocation6 [shape = 's32[1]{0}', space=sflag, size = 0x4, scoped, tag = 'scoped memory for tpu_custom_call.1']
    #allocation7 [shape = 'u8[8192]{0}', space=vmem, size = 0x2000, scoped, tag = 'output window, operand 0, single buffered']
    %7 = vsyncpa [#allocation3], 0
    %8 = vsyncpa [#allocation6], 0
    %9 = vsyncpa [#allocation4], 0
    // Predicated region
    $region2: #{tpu_custom_call.1} parent=1 // pred_check
      _
    $region3: #{tpu_custom_call.1} parent=1 // pred_check_branch
      %11 = sbr.rel (0) target = $region5
    $region4: #{tpu_custom_call.1} parent=1 // pred_region
      %s13 = ssub.s32 256, 256
      %14 = vsyncadd [#allocation3], %s13
      %s15 = sshll.u32 [#allocation2], 4
      %s16 = int_to_ptr.vmem [resolvable:$true] %s15
      %21 = dma.hbm_to_vmem [thread:$0]  %s0, 256, %s16, [#allocation3], 128, 128, 8
    $region5: #{tpu_custom_call.1} parent=1 // pred_fallthru
      _
    // Predicated region
    $region6: #{tpu_custom_call.1} parent=1 // pred_check
      _
    $region7: #{tpu_custom_call.1} parent=1 // pred_check_branch
      %23 = sbr.rel (0) target = $region9
    $region8: #{tpu_custom_call.1} parent=1 // pred_region
      %s25 = ssub.s32 128, 128
      %26 = vsyncadd [#allocation6], %s25
      %s28 = sshll.u32 [#allocation5], 4
      %s29 = int_to_ptr.vmem [resolvable:$true] %s28
      %31 = dma.hbm_to_vmem [thread:$0]  %s1, 128, %s29, [#allocation6]
    $region9: #{tpu_custom_call.1} parent=1 // pred_fallthru
      _
    // Predicated region
    $region10: #{tpu_custom_call.1} parent=1 // pred_check
      _
    $region11: #{tpu_custom_call.1} parent=1 // pred_check_branch
      %33 = sbr.rel (0) target = $region13
    $region12: #{tpu_custom_call.1} parent=1 // pred_region
      %34 = dma.done [#allocation3], 256
    $region13: #{tpu_custom_call.1} parent=1 // pred_fallthru
      _
    // Predicated region
    $region14: #{tpu_custom_call.1} parent=1 // pred_check
      _
    $region15: #{tpu_custom_call.1} parent=1 // pred_check_branch
      %36 = sbr.rel (0) target = $region17
    $region16: #{tpu_custom_call.1} parent=1 // pred_region
      %37 = dma.done [#allocation6], 128
    $region17: #{tpu_custom_call.1} parent=1 // pred_fallthru
      _
    %v38 = vld [vmem:[#allocation2] sm:$0xff]
    %v39 = vld [vmem:[#allocation2 + $0x8] sm:$0xff]
    %v40 = vld [vmem:[#allocation5] sm:$0xff]
    %v41 = vadd.f32 %v38, %v40
    %v42 = vadd.f32 %v39, %v40
    %43 = vst [vmem:[#allocation7] sm:$0xff] %v41
    %44 = vst [vmem:[#allocation7 + $0x8] sm:$0xff] %v42
    // Predicated region
    $region18: #{tpu_custom_call.1} parent=1 // pred_check
      _
    $region19: #{tpu_custom_call.1} parent=1 // pred_check_branch
      %46 = sbr.rel (0) target = $region21
    $region20: #{tpu_custom_call.1} parent=1 // pred_region
      %s48 = ssub.s32 256, 256
      %49 = vsyncadd [#allocation4], %s48
      %s50 = sshll.u32 [#allocation7], 4
      %s51 = int_to_ptr.vmem [resolvable:$true] %s50
      %56 = dma.vmem_to_hbm [thread:$0]  %s51, 256, %s2, [#allocation4], 128, 128, 8
    $region21: #{tpu_custom_call.1} parent=1 // pred_fallthru
      _
    // Predicated region
    $region22: #{tpu_custom_call.1} parent=1 // pred_check
      _
    $region23: #{tpu_custom_call.1} parent=1 // pred_check_branch
      %58 = sbr.rel (0) target = $region25
    $region24: #{tpu_custom_call.1} parent=1 // pred_region
      %59 = dma.done [#allocation4], 256
    $region25: #{tpu_custom_call.1} parent=1 // pred_fallthru
      _
    %60 = vsyncpa [#allocation3], 1
    %61 = vsyncpa [#allocation6], 1
    %62 = vsyncpa [#allocation4], 1

</llo_original>
